<compile_context>
chip_gen: v6e
topology: v6e:2x2x1
jax: 0.10.0
libtpu: 0.0.40
codegen_flags: <defaults>
</compile_context>

<pallas_src>
import jax
import jax.numpy as jnp
from jax.experimental import pallas as pl
from jax.experimental.pallas import tpu as pltpu


def _maxpool_kernel(dec_ref, out_ref):
    # dec_ref: (TB, TT, Dp) in VMEM   out_ref: (TB, Dp) in VMEM (resident over t)
    t = pl.program_id(1)
    blk_max = jnp.max(dec_ref[...], axis=1)          # reduce this T-tile -> (TB, Dp)

    @pl.when(t == 0)
    def _():
        out_ref[...] = blk_max

    @pl.when(t != 0)
    def _():
        out_ref[...] = jnp.maximum(out_ref[...], blk_max)


def max_pool(logits, decision, pooldim=1):
    """Equivalent of MaxPool.forward: torch.max(decision, dim=1)[0]."""
    assert pooldim == 1, "kernel implements pooling over dim=1 (time axis)"
    del logits  # unused by the reference module -> never DMA'd

    B, T, D = decision.shape
    orig_dtype = decision.dtype
    x = decision.astype(jnp.float32)

    # ---- tiling / padding decisions (all static Python ints) ----------------
    LANE, SUBLANE = 128, 8
    target_bytes = 2 * 1024 * 1024                     # ~2 MiB decision block

    Dp = pl.cdiv(D, LANE) * LANE                       # lane-dense last dim
    Tp_full = pl.cdiv(T, SUBLANE) * SUBLANE            # sublane-aligned T

    # T tile: multiple of 8, sized so even an 8-row batch tile stays near target.
    max_tt = max(SUBLANE, (target_bytes // (SUBLANE * Dp * 4)) // SUBLANE * SUBLANE)
    TT = min(Tp_full, max_tt)

    # Batch tile: fill the remaining budget; keep first out-dim layout-friendly.
    max_tb = max(1, target_bytes // (TT * Dp * 4))
    if max_tb >= B:
        TB = B                                         # full batch -> block dim == array dim
    else:
        TB = max(SUBLANE, (max_tb // SUBLANE) * SUBLANE)

    Bp = pl.cdiv(B, TB) * TB
    Tp = pl.cdiv(T, TT) * TT

    # Pad: T padding must be -inf (neutral for max); B/D padding is sliced away.
    pads = ((0, Bp - B), (0, Tp - T), (0, Dp - D))
    if any(p[1] for p in pads):
        x = jnp.pad(x, pads, constant_values=-jnp.inf)

    grid = (Bp // TB, Tp // TT)                        # reduction (T) axis last

    out = pl.pallas_call(
        _maxpool_kernel,
        out_shape=jax.ShapeDtypeStruct((Bp, Dp), jnp.float32),
        grid_spec=pltpu.PrefetchScalarGridSpec(
            num_scalar_prefetch=0,
            grid=grid,
            in_specs=[pl.BlockSpec((TB, TT, Dp), lambda b, t: (b, t, 0))],
            out_specs=pl.BlockSpec((TB, Dp), lambda b, t: (b, 0)),   # accumulator
        ),
        compiler_params=pltpu.CompilerParams(
            dimension_semantics=("parallel", "arbitrary"),
            vmem_limit_bytes=48 * 1024 * 1024,         # headroom on v7x's 64 MiB VMEM
        ),
    )(x)

    return out[:B, :D].astype(orig_dtype)


if __name__ == "__main__":
    # Small shapes consistent with the module: batch=2, seq (pooldim) = 8, outputdim=10
    B, T, D = 2, 8, 10
    key = jax.random.PRNGKey(0)
    k1, k2 = jax.random.split(key)
    logits = jax.random.uniform(k1, (B, T, D), dtype=jnp.float32)
    decision = jax.random.uniform(k2, (B, T, D), dtype=jnp.float32)

    out = max_pool(logits, decision)
    out = jax.block_until_ready(out)

    ref = jnp.max(decision, axis=1)
    assert out.shape == (B, D)
    assert jnp.allclose(out, ref), "mismatch vs reference (small shape)"

    # Second check at a larger, non-aligned shape to exercise padding + T tiling.
    B2, T2, D2 = 16, 40, 200
    k3, k4 = jax.random.split(k2)
    logits2 = jax.random.normal(k3, (B2, T2, D2), dtype=jnp.float32)
    decision2 = jax.random.normal(k4, (B2, T2, D2), dtype=jnp.float32)
    out2 = jax.block_until_ready(max_pool(logits2, decision2))
    ref2 = jnp.max(decision2, axis=1)
    assert out2.shape == (B2, D2)
    assert jnp.allclose(out2, ref2), "mismatch vs reference (tiled shape)"

    print("KERNEL_OK")
</pallas_src>

<mosaic_0001>
module attributes {stable_mosaic.version = 11 : i64} {
  func.func @_maxpool_kernel(%arg0: i32, %arg1: i32, %arg2: memref<2x8x128xf32, #tpu.memory_space<vmem>>, %arg3: memref<2x128xf32, #tpu.memory_space<vmem>>) attributes {dimension_semantics = [#tpu.dimension_semantics<parallel>, #tpu.dimension_semantics<arbitrary>], iteration_bounds = array<i64: 1, 1>, scalar_prefetch = 0 : i64, scratch_operands = 0 : i64, tpu.core_type = #tpu.core_type<tc>, window_params = [{transform_indices = @transform_0, window_bounds = array<i64: 2, 8, 128>}, {transform_indices = @transform_1, window_bounds = array<i64: 2, 128>}]} {
    %c0 = arith.constant 0 : index
    %c0_0 = arith.constant 0 : index
    %c0_1 = arith.constant 0 : index
    %0 = vector.load %arg2[%c0, %c0_0, %c0_1] : memref<2x8x128xf32, #tpu.memory_space<vmem>>, vector<2x8x128xf32>
    %cst = arith.constant dense<0xFF800000> : vector<2x128xf32>
    %1 = vector.multi_reduction <maximumf>, %0, %cst [1] : vector<2x8x128xf32> to vector<2x128xf32>
    %c0_i32 = arith.constant 0 : i32
    %2 = arith.cmpi eq, %arg1, %c0_i32 : i32
    %3 = arith.extui %2 : i1 to i32
    %c0_i32_2 = arith.constant 0 : i32
    %4 = arith.cmpi ne, %3, %c0_i32_2 : i32
    scf.if %4 {
      %c0_5 = arith.constant 0 : index
      %c0_6 = arith.constant 0 : index
      %8 = vector.load %arg3[%c0_5, %c0_6] : memref<2x128xf32, #tpu.memory_space<vmem>>, vector<2x128xf32>
      tpu.vector_store %arg3[%c0_5, %c0_6], %1 {strides = array<i32>} : memref<2x128xf32, #tpu.memory_space<vmem>>, vector<2x128xf32>,
    } else {
    }
    %c0_i32_3 = arith.constant 0 : i32
    %5 = arith.cmpi ne, %arg1, %c0_i32_3 : i32
    %6 = arith.extui %5 : i1 to i32
    %c0_i32_4 = arith.constant 0 : i32
    %7 = arith.cmpi ne, %6, %c0_i32_4 : i32
    scf.if %7 {
      %c0_5 = arith.constant 0 : index
      %c0_6 = arith.constant 0 : index
      %8 = vector.load %arg3[%c0_5, %c0_6] : memref<2x128xf32, #tpu.memory_space<vmem>>, vector<2x128xf32>
      %9 = arith.maximumf %8, %1 : vector<2x128xf32>
      %c0_7 = arith.constant 0 : index
      %c0_8 = arith.constant 0 : index
      %10 = vector.load %arg3[%c0_7, %c0_8] : memref<2x128xf32, #tpu.memory_space<vmem>>, vector<2x128xf32>
      tpu.vector_store %arg3[%c0_7, %c0_8], %9 {strides = array<i32>} : memref<2x128xf32, #tpu.memory_space<vmem>>, vector<2x128xf32>,
    } else {
    }
    return
  }
  func.func @transform_0(%arg0: i32, %arg1: i32) -> (i32, i32, i32) {
    %c0_i32 = arith.constant 0 : i32
    %c0_i32_0 = arith.constant 0 : i32
    return %arg0, %arg1, %c0_i32 : i32, i32, i32
  }
  func.func @transform_1(%arg0: i32, %arg1: i32) -> (i32, i32) {
    %c0_i32 = arith.constant 0 : i32
    %c0_i32_0 = arith.constant 0 : i32
    return %arg0, %c0_i32 : i32, i32
  }
}

</mosaic_0001>

<llo_original>
// kernel: tpu_custom_call.1
$region0: #{tpu_custom_call.1}
  #allocation0 [shape = 'u32[]', space=smem, size = 0x4, offset = 0x4, fixed_abs, tag = 'smem constant byte address 0x4 - core index']
  #allocation1 [shape = 'u32[144,128]{1,0:T(1,128)}', space=vmem, size = 0x12000, scoped, tag = 'internal scratch']
  %s0 = inlined_call_operand.hbm [shape: f32[2,8,128], index: 0, kind: input, shape index: {}]
  %s1 = inlined_call_operand.hbm [shape: f32[2,128], index: 1, kind: output, shape index: {}]
  %s2 = sld [smem:[#allocation0]]
  $region26: #{tpu_custom_call.1} parent=0
    _
  %s4 = ssub.s32 1, %s2
  %s5 = scalar_select 0, %s4, %s2
  $region1: #{tpu_custom_call.1} parent=0
    #allocation2 [shape = 'u8[8192]{0}', space=vmem, size = 0x2000, scoped, tag = 'input window, operand 0, single buffered']
    #allocation3 [shape = 's32[1]{0}', space=sflag, size = 0x4, scoped, tag = 'scoped memory for tpu_custom_call.1']
    #allocation4 [shape = 's32[1]{0}', space=sflag, size = 0x4, scoped, tag = 'scoped memory for tpu_custom_call.1']
    #allocation5 [shape = 'u8[1024]{0}', space=vmem, size = 0x400, scoped, tag = 'output window, operand 0, single buffered']
    %6 = vsyncpa [#allocation3], 0
    %7 = vsyncpa [#allocation4], 0
    // Predicated region
    $region2: #{tpu_custom_call.1} parent=1 // pred_check
      _
    $region3: #{tpu_custom_call.1} parent=1 // pred_check_branch
      %9 = sbr.rel (0) target = $region5
    $region4: #{tpu_custom_call.1} parent=1 // pred_region
      %s11 = ssub.s32 256, 256
      %12 = vsyncadd [#allocation3], %s11
      %s13 = sshll.u32 [#allocation2], 4
      %s14 = int_to_ptr.vmem [resolvable:$true] %s13
      %19 = dma.hbm_to_vmem [thread:$0]  %s0, 256, %s14, [#allocation3], 128, 128, 8
    $region5: #{tpu_custom_call.1} parent=1 // pred_fallthru
      _
    // Predicated region
    $region6: #{tpu_custom_call.1} parent=1 // pred_check
      _
    $region7: #{tpu_custom_call.1} parent=1 // pred_check_branch
      %21 = sbr.rel (0) target = $region9
    $region8: #{tpu_custom_call.1} parent=1 // pred_region
      %22 = dma.done [#allocation3], 256
    $region9: #{tpu_custom_call.1} parent=1 // pred_fallthru
      _
    %v23 = vld [vmem:[#allocation2] sm:$0xff]
    %v24 = vld [vmem:[#allocation2 + $0x8] sm:$0xff]
    %v25 = vrot.slane %v23, 4
    %v26 = vmax.f32 %v23, %v25
    %v27 = vrot.slane %v26, 2
    %v28 = vmax.f32 %v26, %v27
    %v29 = vrot.slane %v28, 1
    %v30 = vmax.f32 %v28, %v29
    %v31 = vrot.slane %v24, 4
    %v32 = vmax.f32 %v24, %v31
    %v33 = vrot.slane %v32, 2
    %v34 = vmax.f32 %v32, %v33
    %v35 = vrot.slane %v34, 1
    %v36 = vmax.f32 %v34, %v35
    %p37 = scmp.eq.s32.totalorder 0, 0
    // Predicated region
    $region10: #{tpu_custom_call.1} parent=1 // pred_check
      %p38 = pneg %p37
    $region11: #{tpu_custom_call.1} parent=1 // pred_check_branch
      %40 = sbr.rel (%p38) target = $region13
    $region12: #{tpu_custom_call.1} parent=1 // pred_region
      %vm43 = vcmask 1041409
      %v44 = vsel %vm43, %v36, %v30
      %46 = vst [vmem:[#allocation5] sm:$0x3] %v44
    $region13: #{tpu_custom_call.1} parent=1 // pred_fallthru
      _
    %p47 = scmp.ne.s32.totalorder 0, 0
    // Predicated region
    $region14: #{tpu_custom_call.1} parent=1 // pred_check
      %p48 = pneg %p47
    $region15: #{tpu_custom_call.1} parent=1 // pred_check_branch
      %50 = sbr.rel (%p48) target = $region17
    $region16: #{tpu_custom_call.1} parent=1 // pred_region
      %v51 = vld [vmem:[#allocation5] sm:$0x3]
      %vm54 = vcmask 1041409
      %v55 = vsel %vm54, %v36, %v30
      %v57 = vmax.f32 %v51, %v55
      %58 = vst [vmem:[#allocation5] sm:$0x3] %v57
    $region17: #{tpu_custom_call.1} parent=1 // pred_fallthru
      _
    // Predicated region
    $region18: #{tpu_custom_call.1} parent=1 // pred_check
      _
    $region19: #{tpu_custom_call.1} parent=1 // pred_check_branch
      %60 = sbr.rel (0) target = $region21
    $region20: #{tpu_custom_call.1} parent=1 // pred_region
      %s62 = ssub.s32 32, 32
      %63 = vsyncadd [#allocation4], %s62
      %s65 = sshll.u32 [#allocation5], 4
      %s66 = int_to_ptr.vmem [resolvable:$true] %s65
      %68 = dma.vmem_to_hbm [thread:$0]  %s66, 32, %s1, [#allocation4]
    $region21: #{tpu_custom_call.1} parent=1 // pred_fallthru
      _
    // Predicated region
    $region22: #{tpu_custom_call.1} parent=1 // pred_check
      _
    $region23: #{tpu_custom_call.1} parent=1 // pred_check_branch
      %70 = sbr.rel (0) target = $region25
    $region24: #{tpu_custom_call.1} parent=1 // pred_region
      %71 = dma.done [#allocation4], 32
    $region25: #{tpu_custom_call.1} parent=1 // pred_fallthru
      _
    %72 = vsyncpa [#allocation3], 1
    %73 = vsyncpa [#allocation4], 1

</llo_original>
